<compile_context>
chip_gen: v7x
topology: tpu7x:2x2x1
jax: 0.10.0
libtpu: 0.0.40
codegen_flags: <defaults>
</compile_context>

<pallas_src>
import functools
import math

import numpy as np

import jax
import jax.numpy as jnp
from jax.experimental import pallas as pl
from jax.experimental.pallas import tpu as pltpu


_MAX_PACKED_LANES = 2048  # cap on group*D for the lane-packing path


# --------------------------------------------------------------------------- #
# host-side table construction (numpy, trace-time)
# --------------------------------------------------------------------------- #

def _round_up(a: int, b: int) -> int:
    return -(-a // b) * b


def _sublane(elem_size: int) -> int:
    return {4: 8, 2: 16, 1: 32}.get(elem_size, 8)


def _packing(d_model: int):
    """Fold `group` consecutive time steps per stored row so the stored lane
    count C is a multiple of 128 (lane-dense, unmasked vst)."""
    D = d_model
    if D % 128 == 0:
        return 1, D
    g = (D * 128) // math.gcd(D, 128) // D      # lcm(D, 128) // D
    if g * D <= _MAX_PACKED_LANES:
        return g, g * D
    # fall back: no time packing; pad lanes up to the next multiple of 128
    return 1, _round_up(D, 128)


def _column_tables(d_model: int, group: int, lanes: int):
    """Per-lane angle constants (float64 numpy): angle[row, c] = row*scale[c]+bias[c]."""
    D = d_model
    d = np.arange(D)
    # inv_freq[d] = exp(-(2*(d//2)) * ln(10000) / D)   (matches torch div_term)
    inv_freq = np.exp((2.0 * (d // 2)) * (-math.log(10000.0) / D))
    # even column -> sin; odd column -> cos == sin(angle + pi/2)
    phase = (d % 2) * (math.pi / 2.0)

    c = np.arange(lanes)
    d_idx = c % D
    valid = c < group * D                       # lanes beyond group*D are padding
    t_sub = np.where(valid, c // D, 0)          # time offset inside a packed row
    scale = np.where(valid, group * inv_freq[d_idx], 0.0)
    bias = np.where(valid, t_sub * inv_freq[d_idx] + phase[d_idx], 0.0)
    return scale[None, :], bias[None, :]        # (1, C) float64 each


def _tile_tables(scale: np.ndarray, bias: np.ndarray, tile_r: int):
    """Within-tile offset tables S = sin(P), Cs = cos(P), P[r,c] = r*scale+bias."""
    r = np.arange(tile_r, dtype=np.float64)[:, None]
    p = r * scale + bias
    return np.sin(p).astype(np.float32), np.cos(p).astype(np.float32)


def _choose_tile_r(R: int, C: int, elem_size: int, tile_rows, target_bytes: int):
    """Pick (tile_r, R_out): dtype-aware sublane alignment, ~1 MiB blocks,
    >=2 grid steps when possible (v7x megacore), divisor-of-R preferred so the
    last block is full (no masked stores, no wrapper-side pad/slice copy)."""
    sub = _sublane(elem_size)
    if tile_rows is None:
        want = max(sub, target_bytes // max(1, C * elem_size))
    else:
        want = max(1, int(tile_rows))
    # keep at least 2 grid steps when R is big enough to split on sublane bounds
    if R >= 2 * sub:
        want = min(want, _round_up(-(-R // 2), sub))
    if want >= R:
        return R, R                               # single block; exact dims allowed
    tile_r = max(sub, (want // sub) * sub)
    if tile_r >= R:
        return R, R
    if R % tile_r:
        best = 0
        t = sub
        while t <= want:
            if R % t == 0:
                best = t
            t += sub
        if best:
            tile_r = best                         # exact tiling, no remainder
        else:
            return tile_r, _round_up(R, tile_r)   # pad; caller slices afterwards
    return tile_r, R


# --------------------------------------------------------------------------- #
# kernels
# --------------------------------------------------------------------------- #

def _pe_table_kernel(scale_ref, psin_ref, pcos_ref, o_ref, *, rows_per_block: int):
    # scale_ref: (1, C) f32   angle scale per lane (resident)
    # psin_ref / pcos_ref: (tile_r, C) f32  sin/cos of the within-tile offsets (resident)
    # o_ref: (tile_r, C) output block.
    # angle = base*scale + P  ->  sin = sin(base*scale)*cos(P) + cos(base*scale)*sin(P)
    base = (pl.program_id(0) * rows_per_block).astype(jnp.float32)
    a = base * scale_ref[...]                     # (1, C)
    pe = jnp.sin(a) * pcos_ref[...] + jnp.cos(a) * psin_ref[...]   # 2 FMAs / element
    o_ref[...] = pe.astype(o_ref.dtype)


def _add_pe_kernel(emb_ref, scale_ref, psin_ref, pcos_ref, o_ref, *, rows_per_block: int):
    # Fused consumer add: o = emb + pe  (pe never hits HBM).
    base = (pl.program_id(0) * rows_per_block).astype(jnp.float32)
    a = base * scale_ref[...]
    pe = jnp.sin(a) * pcos_ref[...] + jnp.cos(a) * psin_ref[...]   # (tile_r, C) f32
    x = emb_ref[...].astype(jnp.float32)                           # (B, tile_r, C)
    o_ref[...] = (x + pe[None]).astype(o_ref.dtype)


# --------------------------------------------------------------------------- #
# wrappers
# --------------------------------------------------------------------------- #

def positional_encoding(length: int, d_model: int, *, dtype=jnp.float32,
                        tile_rows=None, target_block_bytes: int = 1 << 20) -> jax.Array:
    """Sinusoidal table of shape (1, length, d_model) (matches torch module)."""
    assert d_model % 2 == 0, "d_model must be even for the sin/cos interleave"
    T, D = length, d_model

    group, C = _packing(D)
    T_pad = _round_up(T, group)
    R = T_pad // group                       # stored rows (packed)
    elem = np.dtype(dtype).itemsize
    tile_r, R_out = _choose_tile_r(R, C, elem, tile_rows, target_block_bytes)

    scale_np, bias_np = _column_tables(D, group, C)
    psin_np, pcos_np = _tile_tables(scale_np, bias_np, tile_r)
    scale = jnp.asarray(scale_np, jnp.float32)
    psin = jnp.asarray(psin_np)
    pcos = jnp.asarray(pcos_np)

    grid = (R_out // tile_r,)
    kernel = functools.partial(_pe_table_kernel, rows_per_block=tile_r)

    packed = pl.pallas_call(
        kernel,
        out_shape=jax.ShapeDtypeStruct((R_out, C), dtype),
        grid=grid,
        in_specs=[
            pl.BlockSpec((1, C), lambda i: (0, 0)),        # resident constants
            pl.BlockSpec((tile_r, C), lambda i: (0, 0)),
            pl.BlockSpec((tile_r, C), lambda i: (0, 0)),
        ],
        out_specs=pl.BlockSpec((tile_r, C), lambda i: (i, 0)),
        compiler_params=pltpu.CompilerParams(dimension_semantics=("parallel",)),
    )(scale, psin, pcos)

    pe = packed
    if R_out != R:
        pe = pe[:R]
    if C != group * D:
        pe = pe[:, :group * D]
    pe = pe.reshape(R * group, D)
    if R * group != T:
        pe = pe[:T]
    return pe[None]


def add_positional_encoding(emb: jax.Array, *, tile_rows=None,
                            target_block_bytes: int = 1 << 20) -> jax.Array:
    """Fused `emb + pe[:, :T]` -- the recommended path (no HBM table round trip)."""
    B, T, D = emb.shape
    assert D % 2 == 0, "d_model must be even for the sin/cos interleave"

    # lane-pack only when it is a free (contiguous) reshape of emb
    if D % 128 == 0:
        group, C = 1, D
    else:
        g = (D * 128) // math.gcd(D, 128) // D
        if g * D <= _MAX_PACKED_LANES and T % g == 0:
            group, C = g, g * D
        else:
            group, C = 1, D
            # TODO(synk): masked-lane stores when D % 128 != 0 and packing is not free.

    R = T // group
    x = emb.reshape(B, R, C)
    elem = np.dtype(emb.dtype).itemsize
    tile_r, R_out = _choose_tile_r(R, C, elem, tile_rows, target_block_bytes)
    if R_out != R:
        x = jnp.pad(x, ((0, 0), (0, R_out - R), (0, 0)))

    scale_np, bias_np = _column_tables(D, group, C)
    psin_np, pcos_np = _tile_tables(scale_np, bias_np, tile_r)
    scale = jnp.asarray(scale_np, jnp.float32)
    psin = jnp.asarray(psin_np)
    pcos = jnp.asarray(pcos_np)

    grid = (R_out // tile_r,)
    kernel = functools.partial(_add_pe_kernel, rows_per_block=tile_r)

    y = pl.pallas_call(
        kernel,
        out_shape=jax.ShapeDtypeStruct((B, R_out, C), emb.dtype),
        grid=grid,
        in_specs=[
            pl.BlockSpec((B, tile_r, C), lambda i: (0, i, 0)),
            pl.BlockSpec((1, C), lambda i: (0, 0)),
            pl.BlockSpec((tile_r, C), lambda i: (0, 0)),
            pl.BlockSpec((tile_r, C), lambda i: (0, 0)),
        ],
        out_specs=pl.BlockSpec((B, tile_r, C), lambda i: (0, i, 0)),
        compiler_params=pltpu.CompilerParams(dimension_semantics=("parallel",)),
    )(x, scale, psin, pcos)

    if R_out != R:
        y = y[:, :R]
    return y.reshape(B, T, D)


class PositionalEncoding:
    """JAX/Pallas equivalent of the PyTorch PositionalEncoding module.

    __call__(x) returns pe[:, :x.shape[1]] of shape (1, T, d_model), matching
    the torch forward.  For production use prefer `add_positional_encoding`,
    which fuses the table directly into the consumer add.
    """

    def __init__(self, d_model: int, max_len: int = 5000, *, tile_rows=None,
                 dtype=jnp.float32):
        assert d_model % 2 == 0, "d_model must be even for the sin/cos interleave"
        self.d_model = d_model
        self.max_len = max_len          # parity only; table is generated on demand
        self.tile_rows = tile_rows
        self.dtype = dtype              # bfloat16 recommended when the consumer is bf16

    def __call__(self, x: jax.Array) -> jax.Array:
        return positional_encoding(x.shape[1], self.d_model,
                                   tile_rows=self.tile_rows, dtype=self.dtype)


# --------------------------------------------------------------------------- #
# reference + demo
# --------------------------------------------------------------------------- #

def _ref_pe(T: int, D: int) -> jax.Array:
    position = jnp.arange(T, dtype=jnp.float32)[:, None]
    div_term = jnp.exp(jnp.arange(0, D, 2, dtype=jnp.float32) * (-math.log(10000.0) / D))
    ref = jnp.zeros((T, D), dtype=jnp.float32)
    ref = ref.at[:, 0::2].set(jnp.sin(position * div_term))
    ref = ref.at[:, 1::2].set(jnp.cos(position * div_term))
    return ref[None]


if __name__ == "__main__":
    key = jax.random.PRNGKey(0)

    # --- PositionalEncoding.forward parity: table of shape (1, T, d_model) ---
    B, T, D = 2, 8, 32
    x = jax.random.normal(key, (B, T, D), dtype=jnp.float32)
    module = PositionalEncoding(d_model=D, max_len=5000)
    pe = jax.block_until_ready(module(x))
    ref = _ref_pe(T, D)
    assert pe.shape == (1, T, D), pe.shape
    assert jnp.allclose(pe, ref, atol=3e-5), float(jnp.max(jnp.abs(pe - ref)))

    # multi-block grid, D >= 128 path, divisor tiling (no masked remainder tile)
    T2, D2 = 40, 128
    x2 = jax.random.normal(key, (1, T2, D2), dtype=jnp.float32)
    pe2 = jax.block_until_ready(PositionalEncoding(D2, tile_rows=16)(x2))
    ref2 = _ref_pe(T2, D2)
    assert pe2.shape == (1, T2, D2), pe2.shape
    assert jnp.allclose(pe2, ref2, atol=3e-5), float(jnp.max(jnp.abs(pe2 - ref2)))

    # bf16 output (halved writeback bytes) with dtype-aware 16-row sublane tiles
    T3, D3 = 256, 32
    x3 = jnp.zeros((1, T3, D3), dtype=jnp.bfloat16)
    pe3 = jax.block_until_ready(
        PositionalEncoding(D3, tile_rows=16, dtype=jnp.bfloat16)(x3))
    ref3 = _ref_pe(T3, D3)
    assert pe3.shape == (1, T3, D3), pe3.shape
    assert jnp.allclose(pe3.astype(jnp.float32), ref3, atol=1e-2), \
        float(jnp.max(jnp.abs(pe3.astype(jnp.float32) - ref3)))

    # fused consumer path (emb + pe): the table never touches HBM
    y = jax.block_until_ready(add_positional_encoding(x))
    assert y.shape == (B, T, D), y.shape
    assert jnp.allclose(y, x + ref, atol=3e-5), float(jnp.max(jnp.abs(y - (x + ref))))
    y2 = jax.block_until_ready(add_positional_encoding(x2, tile_rows=16))
    assert jnp.allclose(y2, x2 + ref2, atol=3e-5), \
        float(jnp.max(jnp.abs(y2 - (x2 + ref2))))

    print("KERNEL_OK")
</pallas_src>

<mosaic_0001>
module attributes {stable_mosaic.version = 11 : i64} {
  func.func @_pe_table_kernel(%arg0: i32, %arg1: memref<1x128xf32, #tpu.memory_space<vmem>>, %arg2: memref<2x128xf32, #tpu.memory_space<vmem>>, %arg3: memref<2x128xf32, #tpu.memory_space<vmem>>, %arg4: memref<2x128xf32, #tpu.memory_space<vmem>>) attributes {dimension_semantics = [#tpu.dimension_semantics<parallel>], iteration_bounds = array<i64: 1>, scalar_prefetch = 0 : i64, scratch_operands = 0 : i64, tpu.core_type = #tpu.core_type<tc>, window_params = [{pipeline_mode = #tpu.pipeline_mode<synchronous>, transform_indices = @transform_0, window_bounds = array<i64: 1, 128>}, {pipeline_mode = #tpu.pipeline_mode<synchronous>, transform_indices = @transform_1, window_bounds = array<i64: 2, 128>}, {pipeline_mode = #tpu.pipeline_mode<synchronous>, transform_indices = @transform_2, window_bounds = array<i64: 2, 128>}, {transform_indices = @transform_3, window_bounds = array<i64: 2, 128>}]} {
    %c2_i32 = arith.constant 2 : i32
    %0 = arith.muli %arg0, %c2_i32 : i32
    %1 = arith.sitofp %0 : i32 to f32
    %c0 = arith.constant 0 : index
    %c0_0 = arith.constant 0 : index
    %2 = vector.load %arg1[%c0, %c0_0] : memref<1x128xf32, #tpu.memory_space<vmem>>, vector<1x128xf32>
    %3 = vector.broadcast %1 : f32 to vector<1x128xf32>
    %4 = arith.mulf %3, %2 : vector<1x128xf32>
    %5 = math.sin %4 : vector<1x128xf32>
    %c0_1 = arith.constant 0 : index
    %c0_2 = arith.constant 0 : index
    %6 = vector.load %arg3[%c0_1, %c0_2] : memref<2x128xf32, #tpu.memory_space<vmem>>, vector<2x128xf32>
    %7 = vector.broadcast %5 : vector<1x128xf32> to vector<2x128xf32>
    %8 = arith.mulf %7, %6 : vector<2x128xf32>
    %9 = math.cos %4 : vector<1x128xf32>
    %c0_3 = arith.constant 0 : index
    %c0_4 = arith.constant 0 : index
    %10 = vector.load %arg2[%c0_3, %c0_4] : memref<2x128xf32, #tpu.memory_space<vmem>>, vector<2x128xf32>
    %11 = vector.broadcast %9 : vector<1x128xf32> to vector<2x128xf32>
    %12 = arith.mulf %11, %10 : vector<2x128xf32>
    %13 = arith.addf %8, %12 : vector<2x128xf32>
    %c0_5 = arith.constant 0 : index
    %c0_6 = arith.constant 0 : index
    %14 = vector.load %arg4[%c0_5, %c0_6] : memref<2x128xf32, #tpu.memory_space<vmem>>, vector<2x128xf32>
    tpu.vector_store %arg4[%c0_5, %c0_6], %13 {strides = array<i32>} : memref<2x128xf32, #tpu.memory_space<vmem>>, vector<2x128xf32>,
    return
  }
  func.func @transform_0(%arg0: i32) -> (i32, i32) {
    %c0_i32 = arith.constant 0 : i32
    %c0_i32_0 = arith.constant 0 : i32
    %c0_i32_1 = arith.constant 0 : i32
    return %c0_i32, %c0_i32_0 : i32, i32
  }
  func.func @transform_1(%arg0: i32) -> (i32, i32) {
    %c0_i32 = arith.constant 0 : i32
    %c0_i32_0 = arith.constant 0 : i32
    %c0_i32_1 = arith.constant 0 : i32
    return %c0_i32, %c0_i32_0 : i32, i32
  }
  func.func @transform_2(%arg0: i32) -> (i32, i32) {
    %c0_i32 = arith.constant 0 : i32
    %c0_i32_0 = arith.constant 0 : i32
    %c0_i32_1 = arith.constant 0 : i32
    return %c0_i32, %c0_i32_0 : i32, i32
  }
  func.func @transform_3(%arg0: i32) -> (i32, i32) {
    %c0_i32 = arith.constant 0 : i32
    %c0_i32_0 = arith.constant 0 : i32
    return %arg0, %c0_i32 : i32, i32
  }
}

</mosaic_0001>

<llo_original>
// kernel: tpu_custom_call.1
$region0: #{tpu_custom_call.1}
  #allocation0 [shape = 'u32[]', space=smem, size = 0x4, offset = 0x4, fixed_abs, tag = 'smem constant byte address 0x4 - core index']
  #allocation1 [shape = 'u32[144,128]{1,0:T(1,128)}', space=vmem, size = 0x12000, scoped, tag = 'internal scratch']
  %s0 = inlined_call_operand.hbm [shape: f32[1,128], index: 0, kind: input, shape index: {}]
  %s1 = inlined_call_operand.vmem [shape: f32[2,128], index: 1, kind: input, shape index: {}]
  %s2 = inlined_call_operand.vmem [shape: f32[2,128], index: 2, kind: input, shape index: {}]
  %s3 = inlined_call_operand.hbm [shape: f32[2,128], index: 3, kind: output, shape index: {}]
  %s4 = sld [smem:[#allocation0]]
  $region26: #{tpu_custom_call.1} parent=0
    _
  %s6 = ssub.s32 1, %s4
  %s7 = scalar_select 0, %s6, %s4
  $region1: #{tpu_custom_call.1} parent=0
    #allocation2 [shape = 'u8[512]{0}', space=vmem, size = 0x400, scoped, tag = 'input window, operand 0, single buffered']
    #allocation3 [shape = 's32[1]{0}', space=sflag, size = 0x4, scoped, tag = 'scoped memory for tpu_custom_call.1']
    #allocation4 [shape = 's32[1]{0}', space=sflag, size = 0x4, scoped, tag = 'scoped memory for tpu_custom_call.1']
    #allocation5 [shape = 'u8[1024]{0}', space=vmem, size = 0x400, scoped, tag = 'output window, operand 0, single buffered']
    %8 = vsyncpa [#allocation3], 0
    %9 = vsyncpa [#allocation4], 0
    // Predicated region
    $region2: #{tpu_custom_call.1} parent=1 // pred_check
      _
    $region3: #{tpu_custom_call.1} parent=1 // pred_check_branch
      %11 = sbr.rel (0) target = $region5
    $region4: #{tpu_custom_call.1} parent=1 // pred_region
      %s13 = ssub.s32 16, 16
      %14 = vsyncadd [#allocation3], %s13
      %s16 = sshll.u32 [#allocation2], 4
      %s17 = int_to_ptr.vmem [resolvable:$true] %s16
      %19 = dma.hbm_to_vmem [thread:$0]  %s0, 16, %s17, [#allocation3]
    $region5: #{tpu_custom_call.1} parent=1 // pred_fallthru
      _
    // Predicated region
    $region6: #{tpu_custom_call.1} parent=1 // pred_check
      _
    $region7: #{tpu_custom_call.1} parent=1 // pred_check_branch
      %21 = sbr.rel (0) target = $region9
    $region8: #{tpu_custom_call.1} parent=1 // pred_region
      _
    $region9: #{tpu_custom_call.1} parent=1 // pred_fallthru
      _
    // Predicated region
    $region10: #{tpu_custom_call.1} parent=1 // pred_check
      _
    $region11: #{tpu_custom_call.1} parent=1 // pred_check_branch
      %23 = sbr.rel (0) target = $region13
    $region12: #{tpu_custom_call.1} parent=1 // pred_region
      _
    $region13: #{tpu_custom_call.1} parent=1 // pred_fallthru
      _
    // Predicated region
    $region14: #{tpu_custom_call.1} parent=1 // pred_check
      _
    $region15: #{tpu_custom_call.1} parent=1 // pred_check_branch
      %25 = sbr.rel (0) target = $region17
    $region16: #{tpu_custom_call.1} parent=1 // pred_region
      %26 = dma.done [#allocation3], 16
    $region17: #{tpu_custom_call.1} parent=1 // pred_fallthru
      _
    %s27 = smul.u32 0, 2
    %s28 = scvt.s32.f32 %s27
    %v29 = vld [vmem:[#allocation2] sm:$0x1]
    %v30 = vstv %s28
    %v31 = vmul.f32 %v30, %v29
    %v32 = vand.u32 2147483647, %v31
    %vm33 = vcmp.le.f32.partialorder %v32, 0.7853982
    %vm34 = vcmp.lt.s32.totalorder %v31, 0
    %v35 = vand.u32 %v31, 2139095040
    %v36 = vshrl.u32 %v35, 23
    %v37 = vsub.s32 %v36, 127
    %v38 = vand.u32 2147483647, %v31
    %v39 = vand.u32 %v38, 8388607
    %v40 = vor.u32 %v39, 8388608
    %v41 = vsub.s32 0, %v40
    %v42 = vadd.s32 %v37, 1
    %vm43 = vcmp.gt.s32.totalorder %v42, 0
    %v44 = vsel %vm43, %v42, 0
    %v45 = vshrl.u32 %v44, 5
    %v46 = vand.u32 %v44, 31
    %v47 = vsub.s32 32, %v46
    %v48 = vshrl.u32 683565275, %v47
    %v49 = vshll.u32 683565275, %v46
    %v50 = vshrl.u32 2475754826, %v47
    %v51 = vor.u32 %v49, %v50
    %v52 = vshll.u32 2475754826, %v46
    %v53 = vshrl.u32 2131351028, %v47
    %v54 = vor.u32 %v52, %v53
    %v55 = vshll.u32 2131351028, %v46
    %v56 = vshrl.u32 2102212464, %v47
    %v57 = vor.u32 %v55, %v56
    %v58 = vshll.u32 2102212464, %v46
    %v59 = vshrl.u32 920167782, %v47
    %v60 = vor.u32 %v58, %v59
    %v61 = vshll.u32 920167782, %v46
    %v62 = vshrl.u32 1326507024, %v47
    %v63 = vor.u32 %v61, %v62
    %vm64 = vcmp.lt.s32.totalorder %v45, 1
    %vm65 = vcmp.lt.s32.totalorder %v45, 2
    %vm66 = vcmp.lt.s32.totalorder %v45, 3
    %vm67 = vcmp.lt.s32.totalorder %v45, 4
    %v68 = vsel %vm64, %v48, %v51
    %v69 = vsel %vm67, %v57, 2102212464
    %v70 = vsel %vm66, %v54, %v69
    %v71 = vsel %vm65, %v68, %v70
    %v72 = vsel %vm64, %v51, %v54
    %v73 = vsel %vm67, %v60, 920167782
    %v74 = vsel %vm66, %v57, %v73
    %v75 = vsel %vm65, %v72, %v74
    %v76 = vsel %vm64, %v54, %v57
    %v77 = vsel %vm67, %v63, 1326507024
    %v78 = vsel %vm66, %v60, %v77
    %v79 = vsel %vm65, %v76, %v78
    %v80 = vshll.u32 %v40, 8
    %v81 = vmul.u32.u64.compose %v80, %v79
    %v82 = vextract.low.u32 %v81
    %v83 = vextract.high.u32 %v81
    %v84 = vmul.u32.u64.compose %v80, %v75
    %v85 = vextract.low.u32 %v84
    %v86 = vextract.high.u32 %v84
    %v87 = vmul.u32 %v80, %v71
    %v88 = vadd.s32 %v83, %v85
    %vm89 = vc.u32 %v83, %v85
    %v90 = vadd.s32 %v86, 1
    %v91 = vsel %vm89, %v90, %v86
    %v92 = vadd.s32 %v87, %v91
    %v93 = vadd.s32 %v92, 536870912
    %v94 = vshrl.u32 %v93, 30
    %v95 = vshll.u32 %v94, 30
    %v96 = vsub.s32 %v92, %v95
    %vm97 = vcmp.lt.s32.totalorder %v96, 0
    %v98 = vsub.s32 0, %v96
    %v99 = vsel %vm97, %v98, %v96
    %v100 = vclz %v99
    %v101 = vsub.s32 %v100, 2
    %vm102 = vcmp.gt.s32.totalorder 0, %v101
    %v103 = vsel %vm102, 0, %v101
    %v104 = vsub.s32 32, %v103
    %v105 = vshll.u32 %v96, %v103
    %v106 = vshrl.u32 %v88, %v104
    %v107 = vor.u32 %v105, %v106
    %v108 = vsub.s32 4294967266, %v103
    %v109 = vadd.s32 %v108, 127
    %v110 = vshll.u32 %v109, 23
    %v111 = vor.u32 4788187, %v110
    %v112 = vand.u32 2147483647, %v111
    %v114 = vcvt.s32.f32 %v107
    %v115 = vmul.f32 %v114, %v112
    %v116 = vxor.u32 %v115, 2147483648
    %v117 = vsel %vm34, %v116, %v115
    %v118 = vsub.s32 4, %v94
    %v119 = vsel %vm34, %v118, %v94
    %v120 = vsel %vm33, %v31, %v117
    %v121 = vsel %vm33, 0, %v119
    %v122 = vcosq.f32.pop %v120
    %v123 = vsinq.f32.pop %v120
    %vm124 = vweird.f32 %v31
    %v125 = vadd.s32 %v121, 3
    %v126 = vand.u32 %v125, 3
    %vm127 = vcmp.lt.s32.totalorder %v126, 2
    %vm128 = vcmp.eq.s32.totalorder %v126, 0
    %v129 = vxor.u32 %v123, 2147483648
    %v130 = vsel %vm128, %v122, %v129
    %vm131 = vcmp.eq.s32.totalorder %v126, 2
    %v132 = vxor.u32 %v122, 2147483648
    %v133 = vsel %vm131, %v132, %v123
    %v134 = vsel %vm127, %v130, %v133
    %v135 = vsel %vm124, nan, %v134
    %v136 = vld [vmem:[%s2] sm:$0x3]
    %v138 = vlaneseq
    %v139 = vshrl.u32 %v138, 7
    %v140 = vsub.s32 0, %v139
    %v141 = vrot.slane %v135, %v140
    %v143 = vmul.f32 %v141, %v136
    %v144 = vand.u32 2147483647, %v31
    %vm145 = vcmp.le.f32.partialorder %v144, 0.7853982
    %vm146 = vcmp.lt.s32.totalorder %v31, 0
    %v147 = vand.u32 %v31, 2139095040
    %v148 = vshrl.u32 %v147, 23
    %v149 = vsub.s32 %v148, 127
    %v150 = vand.u32 2147483647, %v31
    %v151 = vand.u32 %v150, 8388607
    %v152 = vor.u32 %v151, 8388608
    %v153 = vsub.s32 0, %v152
    %v154 = vadd.s32 %v149, 1
    %vm155 = vcmp.gt.s32.totalorder %v154, 0
    %v156 = vsel %vm155, %v154, 0
    %v157 = vshrl.u32 %v156, 5
    %v158 = vand.u32 %v156, 31
    %v159 = vsub.s32 32, %v158
    %v160 = vshrl.u32 683565275, %v159
    %v161 = vshll.u32 683565275, %v158
    %v162 = vshrl.u32 2475754826, %v159
    %v163 = vor.u32 %v161, %v162
    %v164 = vshll.u32 2475754826, %v158
    %v165 = vshrl.u32 2131351028, %v159
    %v166 = vor.u32 %v164, %v165
    %v167 = vshll.u32 2131351028, %v158
    %v168 = vshrl.u32 2102212464, %v159
    %v169 = vor.u32 %v167, %v168
    %v170 = vshll.u32 2102212464, %v158
    %v171 = vshrl.u32 920167782, %v159
    %v172 = vor.u32 %v170, %v171
    %v173 = vshll.u32 920167782, %v158
    %v174 = vshrl.u32 1326507024, %v159
    %v175 = vor.u32 %v173, %v174
    %vm176 = vcmp.lt.s32.totalorder %v157, 1
    %vm177 = vcmp.lt.s32.totalorder %v157, 2
    %vm178 = vcmp.lt.s32.totalorder %v157, 3
    %vm179 = vcmp.lt.s32.totalorder %v157, 4
    %v180 = vsel %vm176, %v160, %v163
    %v181 = vsel %vm179, %v169, 2102212464
    %v182 = vsel %vm178, %v166, %v181
    %v183 = vsel %vm177, %v180, %v182
    %v184 = vsel %vm176, %v163, %v166
    %v185 = vsel %vm179, %v172, 920167782
    %v186 = vsel %vm178, %v169, %v185
    %v187 = vsel %vm177, %v184, %v186
    %v188 = vsel %vm176, %v166, %v169
    %v189 = vsel %vm179, %v175, 1326507024
    %v190 = vsel %vm178, %v172, %v189
    %v191 = vsel %vm177, %v188, %v190
    %v192 = vshll.u32 %v152, 8
    %v193 = vmul.u32.u64.compose %v192, %v191
    %v194 = vextract.low.u32 %v193
    %v195 = vextract.high.u32 %v193
    %v196 = vmul.u32.u64.compose %v192, %v187
    %v197 = vextract.low.u32 %v196
    %v198 = vextract.high.u32 %v196
    %v199 = vmul.u32 %v192, %v183
    %v200 = vadd.s32 %v195, %v197
    %vm201 = vc.u32 %v195, %v197
    %v202 = vadd.s32 %v198, 1
    %v203 = vsel %vm201, %v202, %v198
    %v204 = vadd.s32 %v199, %v203
    %v205 = vadd.s32 %v204, 536870912
    %v206 = vshrl.u32 %v205, 30
    %v207 = vshll.u32 %v206, 30
    %v208 = vsub.s32 %v204, %v207
    %vm209 = vcmp.lt.s32.totalorder %v208, 0
    %v210 = vsub.s32 0, %v208
    %v211 = vsel %vm209, %v210, %v208
    %v212 = vclz %v211
    %v213 = vsub.s32 %v212, 2
    %vm214 = vcmp.gt.s32.totalorder 0, %v213
    %v215 = vsel %vm214, 0, %v213
    %v216 = vsub.s32 32, %v215
    %v217 = vshll.u32 %v208, %v215
    %v218 = vshrl.u32 %v200, %v216
    %v219 = vor.u32 %v217, %v218
    %v220 = vsub.s32 4294967266, %v215
    %v221 = vadd.s32 %v220, 127
    %v222 = vshll.u32 %v221, 23
    %v223 = vor.u32 4788187, %v222
    %v224 = vand.u32 2147483647, %v223
    %v226 = vcvt.s32.f32 %v219
    %v227 = vmul.f32 %v226, %v224
    %v228 = vxor.u32 %v227, 2147483648
    %v229 = vsel %vm146, %v228, %v227
    %v230 = vsub.s32 4, %v206
    %v231 = vsel %vm146, %v230, %v206
    %v232 = vsel %vm145, %v31, %v229
    %v233 = vsel %vm145, 0, %v231
    %v234 = vcosq.f32.pop %v232
    %v235 = vsinq.f32.pop %v232
    %vm236 = vweird.f32 %v31
    %v237 = vand.u32 %v233, 3
    %vm238 = vcmp.lt.s32.totalorder %v237, 2
    %vm239 = vcmp.eq.s32.totalorder %v237, 0
    %v240 = vxor.u32 %v235, 2147483648
    %v241 = vsel %vm239, %v234, %v240
    %vm242 = vcmp.eq.s32.totalorder %v237, 2
    %v243 = vxor.u32 %v234, 2147483648
    %v244 = vsel %vm242, %v243, %v235
    %v245 = vsel %vm238, %v241, %v244
    %v246 = vsel %vm236, nan, %v245
    %v247 = vld [vmem:[%s1] sm:$0x3]
    %v249 = vlaneseq
    %v250 = vshrl.u32 %v249, 7
    %v251 = vsub.s32 0, %v250
    %v252 = vrot.slane %v246, %v251
    %v254 = vmul.f32 %v252, %v247
    %v255 = vadd.f32 %v143, %v254
    %256 = vst [vmem:[#allocation5] sm:$0x3] %v255
    // Predicated region
    $region18: #{tpu_custom_call.1} parent=1 // pred_check
      _
    $region19: #{tpu_custom_call.1} parent=1 // pred_check_branch
      %258 = sbr.rel (0) target = $region21
    $region20: #{tpu_custom_call.1} parent=1 // pred_region
      %s260 = ssub.s32 32, 32
      %261 = vsyncadd [#allocation4], %s260
      %s263 = sshll.u32 [#allocation5], 4
      %s264 = int_to_ptr.vmem [resolvable:$true] %s263
      %266 = dma.vmem_to_hbm [thread:$0]  %s264, 32, %s3, [#allocation4]
    $region21: #{tpu_custom_call.1} parent=1 // pred_fallthru
      _
    // Predicated region
    $region22: #{tpu_custom_call.1} parent=1 // pred_check
      _
    $region23: #{tpu_custom_call.1} parent=1 // pred_check_branch
      %268 = sbr.rel (0) target = $region25
    $region24: #{tpu_custom_call.1} parent=1 // pred_region
      %269 = dma.done [#allocation4], 32
    $region25: #{tpu_custom_call.1} parent=1 // pred_fallthru
      _
    %270 = vsyncpa [#allocation3], 1
    %271 = vsyncpa [#allocation4], 1

</llo_original>
